<compile_context>
chip_gen: v5e
topology: v5e:2x2
jax: 0.10.0
libtpu: 0.0.40
codegen_flags: <defaults>
</compile_context>

<pallas_src>
import math

import jax
import jax.numpy as jnp
from jax.experimental import pallas as pl
from jax.experimental.pallas import tpu as pltpu


def _round_up(x, m):
    return ((x + m - 1) // m) * m


def _pick_block_rows(rows, target=1024):
    """Lane-dense row block: multiple of 128, <= target, and (when the problem
    is big enough) at least two blocks so v7x's 2 TensorCores both get work."""
    rows128 = _round_up(rows, 128)
    if rows128 <= 128:
        return 128
    blk = min(target, max(128, rows128 // 2))
    return max(128, (blk // 128) * 128)


# ----------------------------- Kernel 1: CoPE unit ---------------------------
def _cope_unit_kernel(tri_ref, attn_ref, logits_ref, o_ref):
    """Transposed, lane-dense layout.

    tri_ref:    (Sk, Sk)        tri[j, k] = 1.0 if k >= j else 0.0 (resident)
    attn_ref:   (Sk, Rblk)      attention-logit strip, keys on sublanes
    logits_ref: (npos, Rblk)    q @ pos_emb interpolation table
    o_ref:      (Sk, Rblk)
    """
    npos = logits_ref.shape[0]

    gates = jax.nn.sigmoid(attn_ref[...].astype(jnp.float32))           # (Sk, R)
    # reverse cumsum along keys:  pos[j, r] = sum_{k >= j} gates[k, r]
    pos = jnp.dot(tri_ref[...], gates,
                  preferred_element_type=jnp.float32,
                  precision=jax.lax.Precision.HIGHEST)                  # (Sk, R)
    pos = jnp.minimum(pos, jnp.float32(npos - 1))                       # clamp(max=)

    logits = logits_ref[...].astype(jnp.float32)                        # (npos, R)
    # gather(floor/ceil) + linear interpolation == triangular-hat weighted sum
    out = jnp.zeros_like(pos)
    for n in range(npos):
        w = jnp.maximum(0.0, 1.0 - jnp.abs(pos - jnp.float32(n)))
        out = out + logits[n:n + 1, :] * w
    o_ref[...] = out.astype(o_ref.dtype)


def cope_unit_pallas(attn_strips, logits_strips, *, target_block_rows=1024):
    """attn_strips: (R, heads, S, Sk), logits_strips: (R, heads, S, npos)
    -> (R, heads, S, Sk) float32."""
    R, heads, S, Sk = attn_strips.shape
    npos = logits_strips.shape[-1]
    rows = R * heads * S

    # Fuse (strip, head, query) into one long axis and put it on LANES so every
    # load / matmul / store in the kernel is lane-dense (128-multiple blocks).
    attn_t = attn_strips.reshape(rows, Sk).T.astype(jnp.float32)        # (Sk, rows)
    logits_t = logits_strips.reshape(rows, npos).T.astype(jnp.float32)  # (npos, rows)

    blk = _pick_block_rows(rows, target_block_rows)
    rows_p = _round_up(rows, blk)
    if rows_p != rows:
        attn_t = jnp.pad(attn_t, ((0, 0), (0, rows_p - rows)))
        logits_t = jnp.pad(logits_t, ((0, 0), (0, rows_p - rows)))

    # Upper-triangular (incl. diagonal) reverse-cumsum operator; constant
    # index_map keeps it resident in VMEM across grid steps.
    tri = (jnp.arange(Sk)[:, None] <= jnp.arange(Sk)[None, :]).astype(jnp.float32)

    out_t = pl.pallas_call(
        _cope_unit_kernel,
        out_shape=jax.ShapeDtypeStruct((Sk, rows_p), jnp.float32),
        grid_spec=pltpu.PrefetchScalarGridSpec(
            num_scalar_prefetch=0,
            grid=(rows_p // blk,),
            in_specs=[
                pl.BlockSpec((Sk, Sk), lambda i: (0, 0)),      # resident constant
                pl.BlockSpec((Sk, blk), lambda i: (0, i)),
                pl.BlockSpec((npos, blk), lambda i: (0, i)),
            ],
            out_specs=pl.BlockSpec((Sk, blk), lambda i: (0, i)),
        ),
        compiler_params=pltpu.CompilerParams(
            dimension_semantics=("parallel",)),
    )(tri, attn_t, logits_t)

    return out_t[:, :rows].T.reshape(R, heads, S, Sk)


# -------------------- Kernel 2: pairwise L2 (cdist) + weighted combine --------
def _cdist_combine_kernel(wx_ref, x_ref, y_ref, xsq_ref, ysq_ref, o_ref):
    """wx_ref: SMEM (1,) f32.
    x_ref: (heads, N, Wd), y_ref: (heads, N, Hd)
    xsq_ref/ysq_ref: (heads, 1, N)  precomputed squared row norms (lane layout)
    o_ref: (heads, N, N) = wx * cdist(x, x) + (1 - wx) * cdist(y, y).
    """
    wx = wx_ref[0]

    def pdist(a, sq_row):
        # Gram identity: ||a_n - a_m||^2 = ||a_n||^2 + ||a_m||^2 - 2 a_n.a_m
        sq_col = jnp.sum(a * a, axis=-1, keepdims=True)                  # (h, N, 1)
        gram = jnp.einsum("hnd,hmd->hnm", a, a,
                          preferred_element_type=jnp.float32,
                          precision=jax.lax.Precision.HIGHEST)           # (h, N, N)
        d2 = sq_col + sq_row - 2.0 * gram
        return jnp.sqrt(jnp.maximum(d2, 0.0))                            # clamp cancellation

    x = x_ref[...].astype(jnp.float32)
    y = y_ref[...].astype(jnp.float32)
    out = wx * pdist(x, xsq_ref[...]) + (1.0 - wx) * pdist(y, ysq_ref[...])
    o_ref[...] = out.astype(o_ref.dtype)


def cdist_combine_pallas(pe_x, pe_y, wx):
    """pe_x: (B, heads, N, Wd), pe_y: (B, heads, N, Hd) -> (B, heads, N, N)."""
    B, heads, N, Wd = pe_x.shape
    Hd = pe_y.shape[-1]
    wx_arr = jnp.asarray(wx, jnp.float32).reshape((1,))

    # Squared row norms in the "row vector" orientation (lane axis = N), so the
    # kernel never has to do a sublane<->lane relayout.
    pe_x_sq = jnp.sum(pe_x * pe_x, axis=-1)[:, :, None, :]   # (B, heads, 1, N)
    pe_y_sq = jnp.sum(pe_y * pe_y, axis=-1)[:, :, None, :]   # (B, heads, 1, N)

    return pl.pallas_call(
        _cdist_combine_kernel,
        out_shape=jax.ShapeDtypeStruct((B, heads, N, N), jnp.float32),
        grid_spec=pltpu.PrefetchScalarGridSpec(
            num_scalar_prefetch=0,
            grid=(B,),
            in_specs=[
                pl.BlockSpec(memory_space=pltpu.MemorySpace.SMEM),       # wx
                pl.BlockSpec((None, heads, N, Wd), lambda b: (b, 0, 0, 0)),
                pl.BlockSpec((None, heads, N, Hd), lambda b: (b, 0, 0, 0)),
                pl.BlockSpec((None, heads, 1, N), lambda b: (b, 0, 0, 0)),
                pl.BlockSpec((None, heads, 1, N), lambda b: (b, 0, 0, 0)),
            ],
            out_specs=pl.BlockSpec((None, heads, N, N), lambda b: (b, 0, 0, 0)),
        ),
        compiler_params=pltpu.CompilerParams(
            dimension_semantics=("parallel",),
            # Gram rewrite keeps temporaries small; explicit limit leaves
            # headroom under v7x's 64 MiB physical VMEM for large N.
            vmem_limit_bytes=48 * 1024 * 1024),
    )(wx_arr, pe_x, pe_y, pe_x_sq, pe_y_sq)


# ----------------------------- Pure-JAX reference -----------------------------
def _cope_unit_ref(attn, logits_int):
    npos = logits_int.shape[-1]
    gates = jax.nn.sigmoid(attn)
    pos = jnp.flip(jnp.cumsum(jnp.flip(gates, -1), axis=-1), -1)
    pos = jnp.minimum(pos, npos - 1)
    pos_ceil = jnp.ceil(pos).astype(jnp.int32)
    pos_floor = jnp.floor(pos).astype(jnp.int32)
    logits_ceil = jnp.take_along_axis(logits_int, pos_ceil, axis=-1)
    logits_floor = jnp.take_along_axis(logits_int, pos_floor, axis=-1)
    w = pos - pos_floor
    return logits_ceil * w + logits_floor * (1.0 - w)


def _cdist_ref(a):
    diff = a[..., :, None, :] - a[..., None, :, :]
    return jnp.sqrt(jnp.sum(diff * diff, axis=-1))


# ----------------------------- Glue (plain JAX) --------------------------------
def _build_strips(query, attn_logits):
    B, heads, seq_len, head_dim = query.shape
    H = W = int(math.isqrt(seq_len))
    q5 = query.reshape(B, heads, H, W, head_dim)
    q_x = jnp.transpose(q5, (0, 2, 1, 3, 4)).reshape(B * H, heads, W, head_dim)
    q_y = jnp.transpose(q5, (0, 3, 1, 2, 4)).reshape(B * W, heads, H, head_dim)

    a6 = attn_logits.reshape(B, heads, H, W, H, W)
    # attn_x[b,h,i,j,j2] = attn[b,h, i*W+j, i*W+j2]   (torch python double loop)
    attn_x = jnp.transpose(jnp.diagonal(a6, axis1=2, axis2=4), (0, 1, 4, 2, 3))  # (B,heads,H,W,W)
    # attn_y[b,h,i,j,j2] = attn[b,h, j*W+i, j2*W+i]
    attn_y = jnp.transpose(jnp.diagonal(a6, axis1=3, axis2=5), (0, 1, 4, 2, 3))  # (B,heads,W,H,H)

    # NOTE: the reference reshapes (B, heads, H, W, W) -> (B*H, heads, W, W)
    # WITHOUT permuting heads/H first; reproduced verbatim.
    # (The x-path strips could also be read straight from attn_logits with a
    #  diagonal-block index_map; the y path is stride-W so the full attn read
    #  is needed anyway — the XLA gather here is kept for both.)
    attn_x_f = attn_x.reshape(B * H, heads, W, W)
    attn_y_f = attn_y.reshape(B * W, heads, H, H)
    return q_x, q_y, attn_x_f, attn_y_f, (B, heads, H, W, head_dim)


def cope2d_forward(query, attn_logits, pos_emb_x, pos_emb_y, wx, *, use_pallas=True):
    q_x, q_y, attn_x_f, attn_y_f, (B, heads, H, W, head_dim) = _build_strips(
        query, attn_logits)

    # q @ pos_emb is independent of attn; hoist it out of the kernel as one big
    # XLA matmul per axis (npos << head_dim -> much less per-step DMA).
    hi = jax.lax.Precision.HIGHEST
    logits_x = jnp.einsum("rhsd,dn->rhsn", q_x, pos_emb_x, precision=hi)
    logits_y = jnp.einsum("rhsd,dn->rhsn", q_y, pos_emb_y, precision=hi)

    unit = cope_unit_pallas if use_pallas else _cope_unit_ref
    w_x = unit(attn_x_f, logits_x).reshape(B, H, heads, W, W)
    w_y = unit(attn_y_f, logits_y).reshape(B, W, heads, H, H)

    # get_pe: flatten strips into (B, heads, H*W, strip_len) then pairwise L2 + mix
    pe_x = jnp.transpose(w_x, (0, 1, 3, 2, 4)).reshape(B, H * W, heads, W)
    pe_y = jnp.transpose(w_y, (0, 3, 1, 2, 4)).reshape(B, H * W, heads, H)
    pe_x_bh = jnp.transpose(pe_x, (0, 2, 1, 3))   # (B, heads, N, W)
    pe_y_bh = jnp.transpose(pe_y, (0, 2, 1, 3))   # (B, heads, N, H)

    if use_pallas:
        return cdist_combine_pallas(pe_x_bh, pe_y_bh, wx)
    return wx * _cdist_ref(pe_x_bh) + (1.0 - wx) * _cdist_ref(pe_y_bh)


# ----------------------------------- main --------------------------------------
if __name__ == "__main__":
    B, heads, H = 2, 4, 8
    W = H
    seq_len = H * W          # 64
    head_dim = 16
    npos_max = 4

    key = jax.random.PRNGKey(0)
    k1, k2, k3, k4 = jax.random.split(key, 4)
    query = jax.random.normal(k1, (B, heads, seq_len, head_dim), jnp.float32)
    attn_logits = jax.random.normal(k2, (B, heads, seq_len, seq_len), jnp.float32)

    # Parameters (shapes from __init__: pos_emb (1, head_dim, npos_max), wx scalar).
    # PyTorch initialises pos_emb to zeros (output would be identically 0);
    # use small deterministic values so the kernels compute something meaningful.
    pos_emb_x = 0.05 * jax.random.normal(k3, (1, head_dim, npos_max), jnp.float32)
    pos_emb_y = 0.05 * jax.random.normal(k4, (1, head_dim, npos_max), jnp.float32)
    wx = jnp.float32(0.5)

    out = cope2d_forward(query, attn_logits, pos_emb_x[0], pos_emb_y[0], wx,
                         use_pallas=True)
    out = jax.block_until_ready(out)
    assert out.shape == (B, heads, seq_len, seq_len), out.shape

    ref = cope2d_forward(query, attn_logits, pos_emb_x[0], pos_emb_y[0], wx,
                         use_pallas=False)
    ref = jax.block_until_ready(ref)
    # atol slightly above 1e-3: the Gram-identity cdist loses ~sqrt(f32 eps)
    # absolute accuracy where the true distance is ~0 (the diagonal).
    assert jnp.allclose(out, ref, atol=2e-3, rtol=1e-3), float(
        jnp.max(jnp.abs(out - ref)))

    print("KERNEL_OK")
</pallas_src>

<mosaic_0001>
module attributes {stable_mosaic.version = 11 : i64} {
  func.func @_cope_unit_kernel(%arg0: i32, %arg1: memref<8x8xf32, #tpu.memory_space<vmem>>, %arg2: memref<8x256xf32, #tpu.memory_space<vmem>>, %arg3: memref<4x256xf32, #tpu.memory_space<vmem>>, %arg4: memref<8x256xf32, #tpu.memory_space<vmem>>) attributes {dimension_semantics = [#tpu.dimension_semantics<parallel>], iteration_bounds = array<i64: 2>, scalar_prefetch = 0 : i64, scratch_operands = 0 : i64, tpu.core_type = #tpu.core_type<tc>, window_params = [{pipeline_mode = #tpu.pipeline_mode<synchronous>, transform_indices = @transform_0, window_bounds = array<i64: 8, 8>}, {transform_indices = @transform_1, window_bounds = array<i64: 8, 256>}, {transform_indices = @transform_2, window_bounds = array<i64: 4, 256>}, {transform_indices = @transform_3, window_bounds = array<i64: 8, 256>}]} {
    %c0 = arith.constant 0 : index
    %c0_0 = arith.constant 0 : index
    %0 = vector.load %arg2[%c0, %c0_0] : memref<8x256xf32, #tpu.memory_space<vmem>>, vector<8x256xf32>
    %1 = arith.negf %0 : vector<8x256xf32>
    %2 = math.exp %1 : vector<8x256xf32>
    %cst = arith.constant 1.000000e+00 : f32
    %3 = vector.broadcast %cst : f32 to vector<8x256xf32>
    %4 = arith.addf %3, %2 : vector<8x256xf32>
    %5 = arith.divf %3, %4 : vector<8x256xf32>
    %c0_1 = arith.constant 0 : index
    %c0_2 = arith.constant 0 : index
    %6 = vector.load %arg1[%c0_1, %c0_2] : memref<8x8xf32, #tpu.memory_space<vmem>>, vector<8x8xf32>
    %cst_3 = arith.constant dense<0.000000e+00> : vector<8x256xf32>
    %7 = tpu.matmul %6, %5, %cst_3 {dimension_numbers = #tpu.dot_dimension_numbers<[1], [0], [0], [1], [0, 0, 1, 1], [], []>, precision = #tpu.contract_precision<fp32>} : vector<8x8xf32>, vector<8x256xf32>, vector<8x256xf32> -> vector<8x256xf32>
    %cst_4 = arith.constant 3.000000e+00 : f32
    %8 = vector.broadcast %cst_4 : f32 to vector<8x256xf32>
    %9 = arith.minimumf %7, %8 : vector<8x256xf32>
    %c0_5 = arith.constant 0 : index
    %c0_6 = arith.constant 0 : index
    %10 = vector.load %arg3[%c0_5, %c0_6] : memref<4x256xf32, #tpu.memory_space<vmem>>, vector<4x256xf32>
    %cst_7 = arith.constant 0.000000e+00 : f32
    %11 = vector.broadcast %cst_7 : f32 to vector<8x256xf32>
    %cst_8 = arith.constant 0.000000e+00 : f32
    %12 = vector.broadcast %cst_8 : f32 to vector<8x256xf32>
    %13 = arith.subf %9, %12 : vector<8x256xf32>
    %14 = math.absf %13 : vector<8x256xf32>
    %cst_9 = arith.constant 1.000000e+00 : f32
    %15 = vector.broadcast %cst_9 : f32 to vector<8x256xf32>
    %16 = arith.subf %15, %14 : vector<8x256xf32>
    %cst_10 = arith.constant 0.000000e+00 : f32
    %17 = vector.broadcast %cst_10 : f32 to vector<8x256xf32>
    %18 = arith.maximumf %17, %16 : vector<8x256xf32>
    %19 = vector.extract_strided_slice %10 {offsets = [0, 0], sizes = [1, 256], strides = [1, 1]} : vector<4x256xf32> to vector<1x256xf32>
    %20 = vector.broadcast %19 : vector<1x256xf32> to vector<8x256xf32>
    %21 = arith.mulf %20, %18 : vector<8x256xf32>
    %22 = arith.addf %11, %21 : vector<8x256xf32>
    %cst_11 = arith.constant 1.000000e+00 : f32
    %23 = vector.broadcast %cst_11 : f32 to vector<8x256xf32>
    %24 = arith.subf %9, %23 : vector<8x256xf32>
    %25 = math.absf %24 : vector<8x256xf32>
    %cst_12 = arith.constant 1.000000e+00 : f32
    %26 = vector.broadcast %cst_12 : f32 to vector<8x256xf32>
    %27 = arith.subf %26, %25 : vector<8x256xf32>
    %cst_13 = arith.constant 0.000000e+00 : f32
    %28 = vector.broadcast %cst_13 : f32 to vector<8x256xf32>
    %29 = arith.maximumf %28, %27 : vector<8x256xf32>
    %30 = vector.extract_strided_slice %10 {offsets = [1, 0], sizes = [1, 256], strides = [1, 1]} : vector<4x256xf32> to vector<1x256xf32>
    %31 = vector.broadcast %30 : vector<1x256xf32> to vector<8x256xf32>
    %32 = arith.mulf %31, %29 : vector<8x256xf32>
    %33 = arith.addf %22, %32 : vector<8x256xf32>
    %cst_14 = arith.constant 2.000000e+00 : f32
    %34 = vector.broadcast %cst_14 : f32 to vector<8x256xf32>
    %35 = arith.subf %9, %34 : vector<8x256xf32>
    %36 = math.absf %35 : vector<8x256xf32>
    %cst_15 = arith.constant 1.000000e+00 : f32
    %37 = vector.broadcast %cst_15 : f32 to vector<8x256xf32>
    %38 = arith.subf %37, %36 : vector<8x256xf32>
    %cst_16 = arith.constant 0.000000e+00 : f32
    %39 = vector.broadcast %cst_16 : f32 to vector<8x256xf32>
    %40 = arith.maximumf %39, %38 : vector<8x256xf32>
    %41 = vector.extract_strided_slice %10 {offsets = [2, 0], sizes = [1, 256], strides = [1, 1]} : vector<4x256xf32> to vector<1x256xf32>
    %42 = vector.broadcast %41 : vector<1x256xf32> to vector<8x256xf32>
    %43 = arith.mulf %42, %40 : vector<8x256xf32>
    %44 = arith.addf %33, %43 : vector<8x256xf32>
    %cst_17 = arith.constant 3.000000e+00 : f32
    %45 = vector.broadcast %cst_17 : f32 to vector<8x256xf32>
    %46 = arith.subf %9, %45 : vector<8x256xf32>
    %47 = math.absf %46 : vector<8x256xf32>
    %cst_18 = arith.constant 1.000000e+00 : f32
    %48 = vector.broadcast %cst_18 : f32 to vector<8x256xf32>
    %49 = arith.subf %48, %47 : vector<8x256xf32>
    %cst_19 = arith.constant 0.000000e+00 : f32
    %50 = vector.broadcast %cst_19 : f32 to vector<8x256xf32>
    %51 = arith.maximumf %50, %49 : vector<8x256xf32>
    %52 = vector.extract_strided_slice %10 {offsets = [3, 0], sizes = [1, 256], strides = [1, 1]} : vector<4x256xf32> to vector<1x256xf32>
    %53 = vector.broadcast %52 : vector<1x256xf32> to vector<8x256xf32>
    %54 = arith.mulf %53, %51 : vector<8x256xf32>
    %55 = arith.addf %44, %54 : vector<8x256xf32>
    %c0_20 = arith.constant 0 : index
    %c0_21 = arith.constant 0 : index
    %56 = vector.load %arg4[%c0_20, %c0_21] : memref<8x256xf32, #tpu.memory_space<vmem>>, vector<8x256xf32>
    tpu.vector_store %arg4[%c0_20, %c0_21], %55 {strides = array<i32>} : memref<8x256xf32, #tpu.memory_space<vmem>>, vector<8x256xf32>,
    return
  }
  func.func @transform_0(%arg0: i32) -> (i32, i32) {
    %c0_i32 = arith.constant 0 : i32
    %c0_i32_0 = arith.constant 0 : i32
    %c0_i32_1 = arith.constant 0 : i32
    return %c0_i32, %c0_i32_0 : i32, i32
  }
  func.func @transform_1(%arg0: i32) -> (i32, i32) {
    %c0_i32 = arith.constant 0 : i32
    %c0_i32_0 = arith.constant 0 : i32
    return %c0_i32, %arg0 : i32, i32
  }
  func.func @transform_2(%arg0: i32) -> (i32, i32) {
    %c0_i32 = arith.constant 0 : i32
    %c0_i32_0 = arith.constant 0 : i32
    return %c0_i32, %arg0 : i32, i32
  }
  func.func @transform_3(%arg0: i32) -> (i32, i32) {
    %c0_i32 = arith.constant 0 : i32
    %c0_i32_0 = arith.constant 0 : i32
    return %c0_i32, %arg0 : i32, i32
  }
}

</mosaic_0001>

<llo_original>
// kernel: tpu_custom_call.1
$region0: #{tpu_custom_call.1}
  #allocation0 [shape = 'u32[]', space=smem, size = 0x4, offset = 0x4, fixed_abs, tag = 'smem constant byte address 0x4 - core index']
  #allocation1 [shape = 'u32[72,128]{1,0:T(1,128)}', space=vmem, size = 0x9000, scoped, tag = 'internal scratch']
  %s0 = inlined_call_operand.hbm [shape: f32[8,8], index: 0, kind: input, shape index: {}]
  %s1 = inlined_call_operand.hbm [shape: f32[8,512], index: 1, kind: input, shape index: {}]
  %s2 = inlined_call_operand.hbm [shape: f32[4,512], index: 2, kind: input, shape index: {}]
  %s3 = inlined_call_operand.hbm [shape: f32[8,512], index: 3, kind: output, shape index: {}]
  %s4 = sld [smem:[#allocation0]]
  $region57: #{tpu_custom_call.1} parent=0
    _
  %s6 = ssub.s32 1, %s4
  %s7 = scalar_select 0, %s6, %s4
  $region1: #{tpu_custom_call.1} parent=0
    #allocation2 [shape = 'u8[4096]{0}', space=vmem, size = 0x1000, scoped, tag = 'input window, operand 0, single buffered']
    #allocation3 [shape = 's32[2]{0}', space=sflag, size = 0x8, scoped, tag = 'scoped memory for tpu_custom_call.1']
    #allocation4 [shape = 's32[2]{0}', space=sflag, size = 0x8, scoped, tag = 'scoped memory for tpu_custom_call.1']
    #allocation5 [shape = 'u8[16384]{0}', space=vmem, size = 0x4000, scoped, tag = 'input window, operand 1']
    #allocation6 [shape = 's32[2]{0}', space=sflag, size = 0x8, scoped, tag = 'scoped memory for tpu_custom_call.1']
    #allocation7 [shape = 'u8[8192]{0}', space=vmem, size = 0x2000, scoped, tag = 'input window, operand 2']
    #allocation8 [shape = 'u8[16384]{0}', space=vmem, size = 0x4000, scoped, tag = 'output window, operand 0']
    %8 = vsyncpa [#allocation3], 0
    %9 = vsyncpa [#allocation6], 0
    %s10 = scalar_lea.sflag [#allocation6], 1
    %11 = vsyncpa %s10, 0
    %12 = vsyncpa [#allocation4], 0
    %s13 = scalar_lea.sflag [#allocation4], 1
    %14 = vsyncpa %s13, 0
    loop: start=0, step=1, limit=4
    $region2: #{tpu_custom_call.1} parent=1 // loop_pre_header
      _
    $region3: #{tpu_custom_call.1} parent=1 // loop_header
      %s16 = sphi 0, %s20
      %p17 = scmp.ge.s32.totalorder %s16, 4
      %s24 = sphi 0, %s24
      %s26 = sphi 0, %s24
      %s27 = sphi 0, %s26
      %s41 = sphi 0, %s27
      %s47 = sphi 0, %s49
      %s50 = sphi 0, %s47
      %s51 = sphi 0, %s50
      %s67 = sphi 0, %s51
      %s73 = sphi 0, %s75
      %s76 = sphi 0, %s73
      %s77 = sphi 0, %s76
      %s93 = sphi 0, %s77
      %s99 = sphi 0, %s101
      %s102 = sphi 0, %s99
      %s103 = sphi 0, %s102
      %s119 = sphi 0, %s103
    $region4: #{tpu_custom_call.1} parent=1 // loop_header_branch
      %19 = sbr.rel (%p17) target = $region8
    $region5: #{tpu_custom_call.1} parent=1 // loop_body
      %s21 = ssub.s32 %s16, 1
      %s22 = ssub.s32 %s16, 2
      %s23 = sadd.s32 %s16, 1
      %s25 = sadd.s32 %s24, 1
      %p28 = scmp.eq.s32.totalorder %s16, 1
      %p29 = scmp.ne.s32.totalorder %s24, %s26
      %p30 = scmp.eq.s32.totalorder %s16, 0
      %p31 = por %p29, %p30
      %p32 = scmp.ne.s32.totalorder %s24, %s26
      %p33 = scmp.eq.s32.totalorder %s21, 1
      %p34 = por %p32, %p33
      %p35 = scmp.ne.s32.totalorder %s26, %s27
      %p36 = scmp.eq.s32.totalorder %s21, 0
      %p37 = por %p35, %p36
      %p38 = scmp.ne.s32.totalorder %s26, %s27
      %p39 = scmp.eq.s32.totalorder %s22, 1
      %p40 = por %p38, %p39
      %p42 = scmp.ne.s32.totalorder %s27, %s41
      %p43 = scmp.eq.s32.totalorder %s22, 0
      %p44 = por %p42, %p43
      %s45 = ssub.s32 %s16, %s23
      %p46 = scmp.eq.s32.totalorder %s45, 0
      %s48 = sadd.s32 %s47, 1
      %s49 = scalar_select %p46, %s47, %s48
      %p52 = pneg %p46
      %p53 = scmp.eq.s32.totalorder %s16, 1
      %p54 = por %p52, %p53
      %p55 = scmp.ne.s32.totalorder %s47, %s50
      %p56 = scmp.eq.s32.totalorder %s16, 0
      %p57 = por %p55, %p56
      %p58 = scmp.ne.s32.totalorder %s47, %s50
      %p59 = scmp.eq.s32.totalorder %s21, 1
      %p60 = por %p58, %p59
      %p61 = scmp.ne.s32.totalorder %s50, %s51
      %p62 = scmp.eq.s32.totalorder %s21, 0
      %p63 = por %p61, %p62
      %p64 = scmp.ne.s32.totalorder %s50, %s51
      %p65 = scmp.eq.s32.totalorder %s22, 1
      %p66 = por %p64, %p65
      %p68 = scmp.ne.s32.totalorder %s51, %s67
      %p69 = scmp.eq.s32.totalorder %s22, 0
      %p70 = por %p68, %p69
      %s71 = ssub.s32 %s16, %s23
      %p72 = scmp.eq.s32.totalorder %s71, 0
      %s74 = sadd.s32 %s73, 1
      %s75 = scalar_select %p72, %s73, %s74
      %p78 = pneg %p72
      %p79 = scmp.eq.s32.totalorder %s16, 1
      %p80 = por %p78, %p79
      %p81 = scmp.ne.s32.totalorder %s73, %s76
      %p82 = scmp.eq.s32.totalorder %s16, 0
      %p83 = por %p81, %p82
      %p84 = scmp.ne.s32.totalorder %s73, %s76
      %p85 = scmp.eq.s32.totalorder %s21, 1
      %p86 = por %p84, %p85
      %p87 = scmp.ne.s32.totalorder %s76, %s77
      %p88 = scmp.eq.s32.totalorder %s21, 0
      %p89 = por %p87, %p88
      %p90 = scmp.ne.s32.totalorder %s76, %s77
      %p91 = scmp.eq.s32.totalorder %s22, 1
      %p92 = por %p90, %p91
      %p94 = scmp.ne.s32.totalorder %s77, %s93
      %p95 = scmp.eq.s32.totalorder %s22, 0
      %p96 = por %p94, %p95
      %s97 = ssub.s32 %s16, %s23
      %p98 = scmp.eq.s32.totalorder %s97, 0
      %s100 = sadd.s32 %s99, 1
      %s101 = scalar_select %p98, %s99, %s100
      %p104 = pneg %p98
      %p105 = scmp.eq.s32.totalorder %s16, 1
      %p106 = por %p104, %p105
      %p107 = scmp.ne.s32.totalorder %s99, %s102
      %p108 = scmp.eq.s32.totalorder %s16, 0
      %p109 = por %p107, %p108
      %p110 = scmp.ne.s32.totalorder %s99, %s102
      %p111 = scmp.eq.s32.totalorder %s21, 1
      %p112 = por %p110, %p111
      %p113 = scmp.ne.s32.totalorder %s102, %s103
      %p114 = scmp.eq.s32.totalorder %s21, 0
      %p115 = por %p113, %p114
      %p116 = scmp.ne.s32.totalorder %s102, %s103
      %p117 = scmp.eq.s32.totalorder %s22, 1
      %p118 = por %p116, %p117
      %p120 = scmp.ne.s32.totalorder %s103, %s119
      %p121 = scmp.eq.s32.totalorder %s22, 0
      %p122 = por %p120, %p121
      %p123 = scmp.le.s32.totalorder 1, %s16
      %p124 = scmp.lt.s32.totalorder %s16, 3
      %p125 = pnand %p123, %p124
      %p126 = pneg %p125
      // Predicated region
      $region9: #{tpu_custom_call.1} parent=5 // pred_check
        _
      $region10: #{tpu_custom_call.1} parent=5 // pred_check_branch
        %128 = sbr.rel (%p125) target = $region12
      $region11: #{tpu_custom_call.1} parent=5 // pred_region
        %s129 = ssub.s32 %s16, 1
        // Predicated region
        $region13: #{tpu_custom_call.1} parent=11 // pred_check
          %p130 = pneg %p37
        $region14: #{tpu_custom_call.1} parent=11 // pred_check_branch
          %132 = sbr.rel (%p130) target = $region16
        $region15: #{tpu_custom_call.1} parent=11 // pred_region
          %134 = vsyncadd [#allocation3], 0
          %s136 = sshll.u32 %s0, 4
          %s137 = int_to_ptr.hbm [resolvable:$true] %s136
          %s138 = sshll.u32 [#allocation2], 4
          %s139 = int_to_ptr.vmem [resolvable:$true] %s138
          %141 = dma.hbm_to_vmem [thread:$0]  %s137, 128, %s139, [#allocation3]
        $region16: #{tpu_custom_call.1} parent=11 // pred_fallthru
          _
      $region12: #{tpu_custom_call.1} parent=5 // pred_fallthru
        _
      %p142 = scmp.lt.s32.totalorder %s16, 2
      // Predicated region
      $region17: #{tpu_custom_call.1} parent=5 // pred_check
        %p143 = pneg %p142
      $region18: #{tpu_custom_call.1} parent=5 // pred_check_branch
        %145 = sbr.rel (%p143) target = $region20
      $region19: #{tpu_custom_call.1} parent=5 // pred_region
        // Predicated region
        $region21: #{tpu_custom_call.1} parent=19 // pred_check
          %p146 = pneg %p57
        $region22: #{tpu_custom_call.1} parent=19 // pred_check_branch
          %148 = sbr.rel (%p146) target = $region24
        $region23: #{tpu_custom_call.1} parent=19 // pred_region
          %s149 = sand.u32 %s16, 1
          %s150 = scalar_lea.sflag [#allocation6], %s149
          %s151 = sand.u32 %s47, 1
          %s152 = smul.addr %s151, 16
          %s153 = scalar_lea.vmem [#allocation5], %s152
          %s154 = smul.u32 2, %s16
          %156 = vsyncadd %s150, 0
          %s157 = smul.addr %s154, 8
          %s158 = scalar_lea.hbm %s1, %s157
          %s160 = sshll.u32 %s158, 4
          %s161 = int_to_ptr.hbm [resolvable:$true] %s160
          %s162 = sshll.u32 %s153, 4
          %s163 = int_to_ptr.vmem [resolvable:$true] %s162
          %165 = dma.hbm_to_vmem [thread:$0]  %s161, 256, %s163, %s150
        $region24: #{tpu_custom_call.1} parent=19 // pred_fallthru
          _
        // Predicated region
        $region25: #{tpu_custom_call.1} parent=19 // pred_check
          %p166 = pneg %p83
        $region26: #{tpu_custom_call.1} parent=19 // pred_check_branch
          %168 = sbr.rel (%p166) target = $region28
        $region27: #{tpu_custom_call.1} parent=19 // pred_region
          %s169 = sand.u32 %s16, 1
          %s170 = scalar_lea.sflag [#allocation6], %s169
          %s171 = sand.u32 %s73, 1
          %s172 = smul.addr %s171, 8
          %s173 = scalar_lea.vmem [#allocation7], %s172
          %s174 = smul.u32 2, %s16
          %176 = vsyncadd %s170, 0
          %s177 = smul.addr %s174, 4
          %s178 = scalar_lea.hbm %s2, %s177
          %s180 = sshll.u32 %s178, 4
          %s181 = int_to_ptr.hbm [resolvable:$true] %s180
          %s182 = sshll.u32 %s173, 4
          %s183 = int_to_ptr.vmem [resolvable:$true] %s182
          %185 = dma.hbm_to_vmem [thread:$0]  %s181, 128, %s183, %s170
        $region28: #{tpu_custom_call.1} parent=19 // pred_fallthru
          _
      $region20: #{tpu_custom_call.1} parent=5 // pred_fallthru
        _
      %p186 = scmp.le.s32.totalorder 1, %s16
      %p187 = scmp.lt.s32.totalorder %s16, 3
      %p188 = pnand %p186, %p187
      %p189 = pneg %p188
      // Predicated region
      $region29: #{tpu_custom_call.1} parent=5 // pred_check
        _
      $region30: #{tpu_custom_call.1} parent=5 // pred_check_branch
        %191 = sbr.rel (%p188) target = $region32
      $region31: #{tpu_custom_call.1} parent=5 // pred_region
        %s192 = ssub.s32 %s16, 1
        // Predicated region
        $region33: #{tpu_custom_call.1} parent=31 // pred_check
          %p193 = pneg %p37
        $region34: #{tpu_custom_call.1} parent=31 // pred_check_branch
          %195 = sbr.rel (%p193) target = $region36
        $region35: #{tpu_custom_call.1} parent=31 // pred_region
          %197 = dma.done [#allocation3], 128
        $region36: #{tpu_custom_call.1} parent=31 // pred_fallthru
          _
        %s198 = sand.u32 %s21, 1
        %s199 = scalar_lea.sflag [#allocation6], %s198
        %s200 = sand.u32 %s50, 1
        %s201 = smul.addr %s200, 16
        %s202 = scalar_lea.vmem [#allocation5], %s201
        // Predicated region
        $region37: #{tpu_custom_call.1} parent=31 // pred_check
          %p203 = pneg %p63
        $region38: #{tpu_custom_call.1} parent=31 // pred_check_branch
          %205 = sbr.rel (%p203) target = $region40
        $region39: #{tpu_custom_call.1} parent=31 // pred_region
          %207 = dma.done %s199, 256
        $region40: #{tpu_custom_call.1} parent=31 // pred_fallthru
          _
        %s208 = sand.u32 %s21, 1
        %s209 = scalar_lea.sflag [#allocation6], %s208
        %s210 = sand.u32 %s76, 1
        %s211 = smul.addr %s210, 8
        %s212 = scalar_lea.vmem [#allocation7], %s211
        // Predicated region
        $region41: #{tpu_custom_call.1} parent=31 // pred_check
          %p213 = pneg %p89
        $region42: #{tpu_custom_call.1} parent=31 // pred_check_branch
          %215 = sbr.rel (%p213) target = $region44
        $region43: #{tpu_custom_call.1} parent=31 // pred_region
          %217 = dma.done %s209, 128
        $region44: #{tpu_custom_call.1} parent=31 // pred_fallthru
          _
        %p218 = pneg %p37
        %p219 = pneg %p34
        %s220 = sand.u32 %s21, 1
        %s221 = scalar_lea.sflag [#allocation6], %s220
        %s222 = sand.u32 %s50, 1
        %s223 = smul.addr %s222, 16
        %s224 = scalar_lea.vmem [#allocation5], %s223
        %p225 = pneg %p63
        %p226 = pneg %p60
        %s227 = sand.u32 %s21, 1
        %s228 = scalar_lea.sflag [#allocation6], %s227
        %s229 = sand.u32 %s76, 1
        %s230 = smul.addr %s229, 8
        %s231 = scalar_lea.vmem [#allocation7], %s230
        %p232 = pneg %p89
        %p233 = pneg %p86
        %p234 = pneg %p115
        %p235 = pneg %p112
        %s236 = sand.u32 %s102, 1
        %s237 = scalar_lea.sflag [#allocation4], %s236
        %s238 = sand.u32 %s102, 1
        %s239 = smul.addr %s238, 16
        %s240 = scalar_lea.vmem [#allocation8], %s239
        %s241 = smul.u32 2, %s21
        %s242 = smul.u32 2, %s21
        %s243 = smul.u32 2, %s21
        %v244 = vld [vmem:[%s202] sm:$0xff]
        %v245 = vld [vmem:[%s202 + $0x8] sm:$0xff]
        %v246 = vxor.u32 %v244, 2147483648
        %v247 = vxor.u32 %v245, 2147483648
        %v248 = vmul.f32 %v246, 1.442695
        %v249 = vpow.pop %v248
        %v250 = vmul.f32 %v247, 1.442695
        %v251 = vpow.pop %v250
        %v252 = vadd.f32 %v249, 1.0
        %v253 = vadd.f32 %v251, 1.0
        %v254 = vrcp.pop %v252
        %v255 = vmul.f32 %v252, %v254
        %v256 = vsub.f32 1.0, %v255
        %v257 = vmul.f32 %v254, %v256
        %v258 = vadd.f32 %v254, %v257
        %vm259 = vweird.f32 %v252
        %vm260 = vweird.f32 %v254
        %vm261 = vmor %vm259, %vm260
        %v262 = vsel %vm261, %v254, %v258
        %v263 = vand.u32 2147483647, %v252
        %vm264 = vcmp.eq.f32.partialorder %v263, 8.507059e+37
        %v265 = vand.u32 %v252, 2147483648
        %v266 = vor.u32 1.1754944e-38, %v265
        %v267 = vsel %vm264, %v266, %v262
        %v268 = vmul.f32 1.0, %v267
        %v269 = vrcp.pop %v253
        %v270 = vmul.f32 %v253, %v269
        %v271 = vsub.f32 1.0, %v270
        %v272 = vmul.f32 %v269, %v271
        %v273 = vadd.f32 %v269, %v272
        %vm274 = vweird.f32 %v253
        %vm275 = vweird.f32 %v269
        %vm276 = vmor %vm274, %vm275
        %v277 = vsel %vm276, %v269, %v273
        %v278 = vand.u32 2147483647, %v253
        %vm279 = vcmp.eq.f32.partialorder %v278, 8.507059e+37
        %v280 = vand.u32 %v253, 2147483648
        %v281 = vor.u32 1.1754944e-38, %v280
        %v282 = vsel %vm279, %v281, %v277
        %v283 = vmul.f32 1.0, %v282
        %v284 = vld [vmem:[#allocation2] sm:$0xff]
        %vm285 = vcmask 64512
        %v287 = vsel %vm285, %v284, 0
        %289 = vmatpush.msra.mxu0 0.0
        %290 = vmatpush.msra.mxu0 0.0
        %291 = vmatpush.msra.mxu0 0.0
        %292 = vmatpush.msra.mxu0 0.0
        %293 = vmatpush.msra.mxu0 0.0
        %294 = vmatpush.msra.mxu0 0.0
        %295 = vmatpush.msra.mxu0 0.0
        %296 = vmatpush.msra.mxu0 0.0
        %297 = vmatpush.msra.mxu0 0.0
        %298 = vmatpush.msra.mxu0 0.0
        %299 = vmatpush.msra.mxu0 0.0
        %300 = vmatpush.msra.mxu0 0.0
        %301 = vmatpush.msra.mxu0 0.0
        %302 = vmatpush.msra.mxu0 0.0
        %303 = vmatpush.msra.mxu0 0.0
        %v304 = vand.u32 %v268, 4294901760
        %305 = vmatpush.msra.mxu0 %v304
        %v306 = vand.u32 %v287, 4294901760
        %v307 = vsub.f32 %v287, %v306
        %v308 = vand.u32 %v307, 4294901760
        %v309 = vsub.f32 %v307, %v308
        %v310 = vand.u32 %v309, 4294901760
        %311 = vmatmul.f32.gmra.mxu0 %v310
        %v312 = vpop.f32.mrf.mxu0
        %v313 = vadd.f32 0.0, %v312
        %314 = vdwg.mxu0
        %315 = vmatpush.msra.mxu0 0.0
        %316 = vmatpush.msra.mxu0 0.0
        %317 = vmatpush.msra.mxu0 0.0
        %318 = vmatpush.msra.mxu0 0.0
        %319 = vmatpush.msra.mxu0 0.0
        %320 = vmatpush.msra.mxu0 0.0
        %321 = vmatpush.msra.mxu0 0.0
        %322 = vmatpush.msra.mxu0 0.0
        %323 = vmatpush.msra.mxu0 0.0
        %324 = vmatpush.msra.mxu0 0.0
        %325 = vmatpush.msra.mxu0 0.0
        %326 = vmatpush.msra.mxu0 0.0
        %327 = vmatpush.msra.mxu0 0.0
        %328 = vmatpush.msra.mxu0 0.0
        %329 = vmatpush.msra.mxu0 0.0
        %v330 = vand.u32 %v268, 4294901760
        %v331 = vsub.f32 %v268, %v330
        %v332 = vand.u32 %v331, 4294901760
        %v333 = vsub.f32 %v331, %v332
        %v334 = vand.u32 %v333, 4294901760
        %335 = vmatpush.msra.mxu0 %v334
        %v336 = vand.u32 %v287, 4294901760
        %337 = vmatmul.f32.gmra.mxu0 %v336
        %v338 = vpop.f32.mrf.mxu0
        %v339 = vadd.f32 %v313, %v338
        %340 = vdwg.mxu0
        %341 = vmatpush.msra.mxu0 0.0
        %342 = vmatpush.msra.mxu0 0.0
        %343 = vmatpush.msra.mxu0 0.0
        %344 = vmatpush.msra.mxu0 0.0
        %345 = vmatpush.msra.mxu0 0.0
        %346 = vmatpush.msra.mxu0 0.0
        %347 = vmatpush.msra.mxu0 0.0
        %348 = vmatpush.msra.mxu0 0.0
        %349 = vmatpush.msra.mxu0 0.0
        %350 = vmatpush.msra.mxu0 0.0
        %351 = vmatpush.msra.mxu0 0.0
        %352 = vmatpush.msra.mxu0 0.0
        %353 = vmatpush.msra.mxu0 0.0
        %354 = vmatpush.msra.mxu0 0.0
        %355 = vmatpush.msra.mxu0 0.0
        %v356 = vand.u32 %v268, 4294901760
        %v357 = vsub.f32 %v268, %v356
        %358 = vmatpush.msra.mxu0 %v357
        %v359 = vand.u32 %v287, 4294901760
        %v360 = vsub.f32 %v287, %v359
        %361 = vmatmul.f32.gmra.mxu0 %v360
        %v362 = vpop.f32.mrf.mxu0
        %v363 = vadd.f32 %v339, %v362
        %364 = vdwg.mxu0
        %365 = vmatpush.msra.mxu0 0.0
        %366 = vmatpush.msra.mxu0 0.0
        %367 = vmatpush.msra.mxu0 0.0
        %368 = vmatpush.msra.mxu0 0.0
        %369 = vmatpush.msra.mxu0 0.0
        %370 = vmatpush.msra.mxu0 0.0
        %371 = vmatpush.msra.mxu0 0.0
        %372 = vmatpush.msra.mxu0 0.0
        %373 = vmatpush.msra.mxu0 0.0
        %374 = vmatpush.msra.mxu0 0.0
        %375 = vmatpush.msra.mxu0 0.0
        %376 = vmatpush.msra.mxu0 0.0
        %377 = vmatpush.msra.mxu0 0.0
        %378 = vmatpush.msra.mxu0 0.0
        %379 = vmatpush.msra.mxu0 0.0
        %v380 = vand.u32 %v268, 4294901760
        %381 = vmatpush.msra.mxu0 %v380
        %v382 = vand.u32 %v287, 4294901760
        %v383 = vsub.f32 %v287, %v382
        %v384 = vand.u32 %v383, 4294901760
        %385 = vmatmul.f32.gmra.mxu0 %v384
        %v386 = vpop.f32.mrf.mxu0
        %v387 = vadd.f32 %v363, %v386
        %388 = vdwg.mxu0
        %389 = vmatpush.msra.mxu0 0.0
        %390 = vmatpush.msra.mxu0 0.0
        %391 = vmatpush.msra.mxu0 0.0
        %392 = vmatpush.msra.mxu0 0.0
        %393 = vmatpush.msra.mxu0 0.0
        %394 = vmatpush.msra.mxu0 0.0
        %395 = vmatpush.msra.mxu0 0.0
        %396 = vmatpush.msra.mxu0 0.0
        %397 = vmatpush.msra.mxu0 0.0
        %398 = vmatpush.msra.mxu0 0.0
        %399 = vmatpush.msra.mxu0 0.0
        %400 = vmatpush.msra.mxu0 0.0
        %401 = vmatpush.msra.mxu0 0.0
        %402 = vmatpush.msra.mxu0 0.0
        %403 = vmatpush.msra.mxu0 0.0
        %v404 = vand.u32 %v268, 4294901760
        %v405 = vsub.f32 %v268, %v404
        %v406 = vand.u32 %v405, 4294901760
        %407 = vmatpush.msra.mxu0 %v406
        %v408 = vand.u32 %v287, 4294901760
        %409 = vmatmul.f32.gmra.mxu0 %v408
        %v410 = vpop.f32.mrf.mxu0
        %v411 = vadd.f32 %v387, %v410
        %412 = vdwg.mxu0
        %413 = vmatpush.msra.mxu0 0.0
        %414 = vmatpush.msra.mxu0 0.0
        %415 = vmatpush.msra.mxu0 0.0
        %416 = vmatpush.msra.mxu0 0.0
        %417 = vmatpush.msra.mxu0 0.0
        %418 = vmatpush.msra.mxu0 0.0
        %419 = vmatpush.msra.mxu0 0.0
        %420 = vmatpush.msra.mxu0 0.0
        %421 = vmatpush.msra.mxu0 0.0
        %422 = vmatpush.msra.mxu0 0.0
        %423 = vmatpush.msra.mxu0 0.0
        %424 = vmatpush.msra.mxu0 0.0
        %425 = vmatpush.msra.mxu0 0.0
        %426 = vmatpush.msra.mxu0 0.0
        %427 = vmatpush.msra.mxu0 0.0
        %v428 = vand.u32 %v268, 4294901760
        %429 = vmatpush.msra.mxu0 %v428
        %v430 = vand.u32 %v287, 4294901760
        %431 = vmatmul.f32.gmra.mxu0 %v430
        %v432 = vpop.f32.mrf.mxu0
        %v433 = vadd.f32 %v411, %v432
        %434 = vdwg.mxu0
        %435 = vmatpush.msra.mxu0 0.0
        %436 = vmatpush.msra.mxu0 0.0
        %437 = vmatpush.msra.mxu0 0.0
        %438 = vmatpush.msra.mxu0 0.0
        %439 = vmatpush.msra.mxu0 0.0
        %440 = vmatpush.msra.mxu0 0.0
        %441 = vmatpush.msra.mxu0 0.0
        %442 = vmatpush.msra.mxu0 0.0
        %443 = vmatpush.msra.mxu0 0.0
        %444 = vmatpush.msra.mxu0 0.0
        %445 = vmatpush.msra.mxu0 0.0
        %446 = vmatpush.msra.mxu0 0.0
        %447 = vmatpush.msra.mxu0 0.0
        %448 = vmatpush.msra.mxu0 0.0
        %449 = vmatpush.msra.mxu0 0.0
        %v450 = vand.u32 %v283, 4294901760
        %451 = vmatpush.msra.mxu0 %v450
        %v452 = vand.u32 %v287, 4294901760
        %v453 = vsub.f32 %v287, %v452
        %v454 = vand.u32 %v453, 4294901760
        %v455 = vsub.f32 %v453, %v454
        %v456 = vand.u32 %v455, 4294901760
        %457 = vmatmul.f32.gmra.mxu0 %v456
        %v458 = vpop.f32.mrf.mxu0
        %v459 = vadd.f32 0.0, %v458
        %460 = vdwg.mxu0
        %461 = vmatpush.msra.mxu0 0.0
        %462 = vmatpush.msra.mxu0 0.0
        %463 = vmatpush.msra.mxu0 0.0
        %464 = vmatpush.msra.mxu0 0.0
        %465 = vmatpush.msra.mxu0 0.0
        %466 = vmatpush.msra.mxu0 0.0
        %467 = vmatpush.msra.mxu0 0.0
        %468 = vmatpush.msra.mxu0 0.0
        %469 = vmatpush.msra.mxu0 0.0
        %470 = vmatpush.msra.mxu0 0.0
        %471 = vmatpush.msra.mxu0 0.0
        %472 = vmatpush.msra.mxu0 0.0
        %473 = vmatpush.msra.mxu0 0.0
        %474 = vmatpush.msra.mxu0 0.0
        %475 = vmatpush.msra.mxu0 0.0
        %v476 = vand.u32 %v283, 4294901760
        %v477 = vsub.f32 %v283, %v476
        %v478 = vand.u32 %v477, 4294901760
        %v479 = vsub.f32 %v477, %v478
        %v480 = vand.u32 %v479, 4294901760
        %481 = vmatpush.msra.mxu0 %v480
        %v482 = vand.u32 %v287, 4294901760
        %483 = vmatmul.f32.gmra.mxu0 %v482
        %v484 = vpop.f32.mrf.mxu0
        %v485 = vadd.f32 %v459, %v484
        %486 = vdwg.mxu0
        %487 = vmatpush.msra.mxu0 0.0
        %488 = vmatpush.msra.mxu0 0.0
        %489 = vmatpush.msra.mxu0 0.0
        %490 = vmatpush.msra.mxu0 0.0
        %491 = vmatpush.msra.mxu0 0.0
        %492 = vmatpush.msra.mxu0 0.0
        %493 = vmatpush.msra.mxu0 0.0
        %494 = vmatpush.msra.mxu0 0.0
        %495 = vmatpush.msra.mxu0 0.0
        %496 = vmatpush.msra.mxu0 0.0
        %497 = vmatpush.msra.mxu0 0.0
        %498 = vmatpush.msra.mxu0 0.0
        %499 = vmatpush.msra.mxu0 0.0
        %500 = vmatpush.msra.mxu0 0.0
        %501 = vmatpush.msra.mxu0 0.0
        %v502 = vand.u32 %v283, 4294901760
        %v503 = vsub.f32 %v283, %v502
        %504 = vmatpush.msra.mxu0 %v503
        %v505 = vand.u32 %v287, 4294901760
        %v506 = vsub.f32 %v287, %v505
        %507 = vmatmul.f32.gmra.mxu0 %v506
        %v508 = vpop.f32.mrf.mxu0
        %v509 = vadd.f32 %v485, %v508
        %510 = vdwg.mxu0
        %511 = vmatpush.msra.mxu0 0.0
        %512 = vmatpush.msra.mxu0 0.0
        %513 = vmatpush.msra.mxu0 0.0
        %514 = vmatpush.msra.mxu0 0.0
        %515 = vmatpush.msra.mxu0 0.0
        %516 = vmatpush.msra.mxu0 0.0
        %517 = vmatpush.msra.mxu0 0.0
        %518 = vmatpush.msra.mxu0 0.0
        %519 = vmatpush.msra.mxu0 0.0
        %520 = vmatpush.msra.mxu0 0.0
        %521 = vmatpush.msra.mxu0 0.0
        %522 = vmatpush.msra.mxu0 0.0
        %523 = vmatpush.msra.mxu0 0.0
        %524 = vmatpush.msra.mxu0 0.0
        %525 = vmatpush.msra.mxu0 0.0
        %v526 = vand.u32 %v283, 4294901760
        %527 = vmatpush.msra.mxu0 %v526
        %v528 = vand.u32 %v287, 4294901760
        %v529 = vsub.f32 %v287, %v528
        %v530 = vand.u32 %v529, 4294901760
        %531 = vmatmul.f32.gmra.mxu0 %v530
        %v532 = vpop.f32.mrf.mxu0
        %v533 = vadd.f32 %v509, %v532
        %534 = vdwg.mxu0
        %535 = vmatpush.msra.mxu0 0.0
        %536 = vmatpush.msra.mxu0 0.0
        %537 = vmatpush.msra.mxu0 0.0
        %538 = vmatpush.msra.mxu0 0.0
        %539 = vmatpush.msra.mxu0 0.0
        %540 = vmatpush.msra.mxu0 0.0
        %541 = vmatpush.msra.mxu0 0.0
        %542 = vmatpush.msra.mxu0 0.0
        %543 = vmatpush.msra.mxu0 0.0
        %544 = vmatpush.msra.mxu0 0.0
        %545 = vmatpush.msra.mxu0 0.0
        %546 = vmatpush.msra.mxu0 0.0
        %547 = vmatpush.msra.mxu0 0.0
        %548 = vmatpush.msra.mxu0 0.0
        %549 = vmatpush.msra.mxu0 0.0
        %v550 = vand.u32 %v283, 4294901760
        %v551 = vsub.f32 %v283, %v550
        %v552 = vand.u32 %v551, 4294901760
        %553 = vmatpush.msra.mxu0 %v552
        %v554 = vand.u32 %v287, 4294901760
        %555 = vmatmul.f32.gmra.mxu0 %v554
        %v556 = vpop.f32.mrf.mxu0
        %v557 = vadd.f32 %v533, %v556
        %558 = vdwg.mxu0
        %559 = vmatpush.msra.mxu0 0.0
        %560 = vmatpush.msra.mxu0 0.0
        %561 = vmatpush.msra.mxu0 0.0
        %562 = vmatpush.msra.mxu0 0.0
        %563 = vmatpush.msra.mxu0 0.0
        %564 = vmatpush.msra.mxu0 0.0
        %565 = vmatpush.msra.mxu0 0.0
        %566 = vmatpush.msra.mxu0 0.0
        %567 = vmatpush.msra.mxu0 0.0
        %568 = vmatpush.msra.mxu0 0.0
        %569 = vmatpush.msra.mxu0 0.0
        %570 = vmatpush.msra.mxu0 0.0
        %571 = vmatpush.msra.mxu0 0.0
        %572 = vmatpush.msra.mxu0 0.0
        %573 = vmatpush.msra.mxu0 0.0
        %v574 = vand.u32 %v283, 4294901760
        %575 = vmatpush.msra.mxu0 %v574
        %v576 = vand.u32 %v287, 4294901760
        %577 = vmatmul.f32.gmra.mxu0 %v576
        %v578 = vpop.f32.mrf.mxu0
        %v579 = vadd.f32 %v557, %v578
        %580 = vdwg.mxu0
        %v581 = vmin.f32 %v433, 3.0
        %v582 = vmin.f32 %v579, 3.0
        %v583 = vld [vmem:[%s212] sm:$0xff]
        %v584 = vand.u32 2147483647, %v581
        %v585 = vand.u32 2147483647, %v582
        %v586 = vsub.f32 1.0, %v584
        %v587 = vsub.f32 1.0, %v585
        %v588 = vmax.f32 %v586, 0.0
        %v589 = vmax.f32 %v587, 0.0
        %v591 = vperm.slane %v583, 0
        %v592 = vperm.slane %v583, 4
        %v595 = vperm.slane %v591, 0
        %v596 = vperm.slane %v592, 0
        %v597 = vmul.f32 %v595, %v588
        %v598 = vmul.f32 %v596, %v589
        %v599 = vadd.f32 %v597, 0.0
        %v600 = vadd.f32 %v598, 0.0
        %v601 = vsub.f32 %v581, 1.0
        %v602 = vsub.f32 %v582, 1.0
        %v603 = vand.u32 2147483647, %v601
        %v604 = vand.u32 2147483647, %v602
        %v605 = vsub.f32 1.0, %v603
        %v606 = vsub.f32 1.0, %v604
        %v607 = vmax.f32 %v605, 0.0
        %v608 = vmax.f32 %v606, 0.0
        %v609 = vperm.slane %v583, 1
        %v610 = vperm.slane %v583, 5
        %v613 = vperm.slane %v609, 1
        %v614 = vperm.slane %v610, 1
        %v615 = vmul.f32 %v613, %v607
        %v616 = vmul.f32 %v614, %v608
        %v617 = vadd.f32 %v599, %v615
        %v618 = vadd.f32 %v600, %v616
        %v619 = vsub.f32 %v581, 2.0
        %v620 = vsub.f32 %v582, 2.0
        %v621 = vand.u32 2147483647, %v619
        %v622 = vand.u32 2147483647, %v620
        %v623 = vsub.f32 1.0, %v621
        %v624 = vsub.f32 1.0, %v622
        %v625 = vmax.f32 %v623, 0.0
        %v626 = vmax.f32 %v624, 0.0
        %v627 = vperm.slane %v583, 2
        %v628 = vperm.slane %v583, 6
        %v631 = vperm.slane %v627, 2
        %v632 = vperm.slane %v628, 2
        %v633 = vmul.f32 %v631, %v625
        %v634 = vmul.f32 %v632, %v626
        %v635 = vadd.f32 %v617, %v633
        %v636 = vadd.f32 %v618, %v634
        %v637 = vsub.f32 %v581, 3.0
        %v638 = vsub.f32 %v582, 3.0
        %v639 = vand.u32 2147483647, %v637
        %v640 = vand.u32 2147483647, %v638
        %v641 = vsub.f32 1.0, %v639
        %v642 = vsub.f32 1.0, %v640
        %v643 = vmax.f32 %v641, 0.0
        %v644 = vmax.f32 %v642, 0.0
        %v645 = vperm.slane %v583, 3
        %v646 = vperm.slane %v583, 7
        %v649 = vperm.slane %v645, 3
        %v650 = vperm.slane %v646, 3
        %v651 = vmul.f32 %v649, %v643
        %v652 = vmul.f32 %v650, %v644
        %v653 = vadd.f32 %v635, %v651
        %v654 = vadd.f32 %v636, %v652
        %655 = vst [vmem:[%s240] sm:$0xff] %v653
        %656 = vst [vmem:[%s240 + $0x8] sm:$0xff] %v654
        %s657 = sand.u32 %s102, 1
        %s658 = scalar_lea.sflag [#allocation4], %s657
        %s659 = sand.u32 %s102, 1
        %s660 = smul.addr %s659, 16
        %s661 = scalar_lea.vmem [#allocation8], %s660
        // Predicated region
        $region45: #{tpu_custom_call.1} parent=31 // pred_check
          %p662 = pneg %p112
        $region46: #{tpu_custom_call.1} parent=31 // pred_check_branch
          %664 = sbr.rel (%p662) target = $region48
        $region47: #{tpu_custom_call.1} parent=31 // pred_region
          %s665 = smul.u32 2, %s21
          %667 = vsyncadd %s658, 0
          %s668 = smul.addr %s665, 8
          %s669 = scalar_lea.hbm %s3, %s668
          %s671 = sshll.u32 %s661, 4
          %s672 = int_to_ptr.vmem [resolvable:$true] %s671
          %s673 = sshll.u32 %s669, 4
          %s674 = int_to_ptr.hbm [resolvable:$true] %s673
          %676 = dma.vmem_to_hbm [thread:$0]  %s672, 256, %s674, %s658
        $region48: #{tpu_custom_call.1} parent=31 // pred_fallthru
          _
      $region32: #{tpu_custom_call.1} parent=5 // pred_fallthru
        _
      %p677 = scmp.le.s32.totalorder 2, %s16
      // Predicated region
      $region49: #{tpu_custom_call.1} parent=5 // pred_check
        %p678 = pneg %p677
      $region50: #{tpu_custom_call.1} parent=5 // pred_check_branch
        %680 = sbr.rel (%p678) target = $region52
      $region51: #{tpu_custom_call.1} parent=5 // pred_region
        %s681 = ssub.s32 %s16, 2
        // Predicated region
        $region53: #{tpu_custom_call.1} parent=51 // pred_check
          %p682 = pneg %p118
        $region54: #{tpu_custom_call.1} parent=51 // pred_check_branch
          %684 = sbr.rel (%p682) target = $region56
        $region55: #{tpu_custom_call.1} parent=51 // pred_region
          %s685 = sand.u32 %s103, 1
          %s686 = scalar_lea.sflag [#allocation4], %s685
          %s687 = sand.u32 %s103, 1
          %s688 = smul.addr %s687, 16
          %s689 = scalar_lea.vmem [#allocation8], %s688
          %691 = dma.done %s686, 256
        $region56: #{tpu_custom_call.1} parent=51 // pred_fallthru
          _
      $region52: #{tpu_custom_call.1} parent=5 // pred_fallthru
        _
    $region6: #{tpu_custom_call.1} parent=1 // loop_footer
      %s20 = sadd.s32 1, %s16
    $region7: #{tpu_custom_call.1} parent=1 // loop_footer_branch
      %15 = sbr.rel target = $region3
    $region8: #{tpu_custom_call.1} parent=1 // loop_exit
      _
    %692 = vsyncpa [#allocation3], 1
    %s693 = scalar_lea.sflag [#allocation3], 1
    %694 = vsyncpa %s693, 1
    %695 = vsyncpa [#allocation6], 1
    %s696 = scalar_lea.sflag [#allocation6], 1
    %697 = vsyncpa %s696, 1
    %698 = vsyncpa [#allocation4], 1
    %s699 = scalar_lea.sflag [#allocation4], 1
    %700 = vsyncpa %s699, 1

</llo_original>
